<compile_context>
chip_gen: v6e
topology: v6e:2x2x1
jax: 0.10.0
libtpu: 0.0.40
codegen_flags: <defaults>
</compile_context>

<pallas_src>
import math
from functools import partial

import jax
import jax.numpy as jnp
from jax.experimental import pallas as pl
from jax.experimental.pallas import tpu as pltpu

D = 64    # feature dim, fixed by the module (Linear(64, 64))
DP = 128  # padded per-projection lane stripe (one full vreg width)


# ---------------------------------------------------------------------------
# Kernel
# ---------------------------------------------------------------------------
def _attn_kernel(x_ref, wqkv_ref, bqkv_ref, o_ref, *, bblk, seq, use_bf16):
    rows = bblk * seq
    x2 = x_ref[...]                       # (rows, 64)
    w = wqkv_ref[...]                     # (64, 384), bf16 or f32
    if use_bf16:
        x2 = x2.astype(jnp.bfloat16)

    # Fused, lane-padded Q/K/V projection: one MXU matmul + bias.
    # 1/sqrt(D) is already folded into the Q stripe of wqkv/bqkv.
    qkv = jnp.dot(x2, w, preferred_element_type=jnp.float32) + bqkv_ref[...]

    mm_dtype = jnp.bfloat16 if use_bf16 else jnp.float32

    if bblk == 1:
        q = qkv[:, 0 * DP:1 * DP].astype(mm_dtype)     # vreg-aligned slices
        k = qkv[:, 1 * DP:2 * DP].astype(mm_dtype)
        v = qkv[:, 2 * DP:3 * DP].astype(mm_dtype)
        scores = jnp.einsum("qd,kd->qk", q, k, preferred_element_type=jnp.float32)
        m = jnp.max(scores, axis=-1, keepdims=True)
        p = jnp.exp(scores - m)
        inv = 1.0 / jnp.sum(p, axis=-1, keepdims=True)  # exact; tiny (rows, 1) tensor
        p = p * inv
        out = jnp.einsum("qk,kd->qd", p.astype(mm_dtype), v,
                         preferred_element_type=jnp.float32)
        o_ref[...] = out.astype(o_ref.dtype)            # (rows, 128) lane-dense store
    else:
        # Leading-dim split only (seq % 8 == 0) -> no tile-crossing relayout.
        qkv3 = qkv.reshape(bblk, seq, 3 * DP)
        q = qkv3[:, :, 0 * DP:1 * DP].astype(mm_dtype)
        k = qkv3[:, :, 1 * DP:2 * DP].astype(mm_dtype)
        v = qkv3[:, :, 2 * DP:3 * DP].astype(mm_dtype)
        scores = jnp.einsum("bqd,bkd->bqk", q, k, preferred_element_type=jnp.float32)
        m = jnp.max(scores, axis=-1, keepdims=True)
        p = jnp.exp(scores - m)
        inv = 1.0 / jnp.sum(p, axis=-1, keepdims=True)
        p = p * inv
        out = jnp.einsum("bqk,bkd->bqd", p.astype(mm_dtype), v,
                         preferred_element_type=jnp.float32)
        o_ref[...] = out.reshape(rows, DP).astype(o_ref.dtype)


# ---------------------------------------------------------------------------
# Hardware-aware helpers
# ---------------------------------------------------------------------------
def _num_tensorcores():
    try:
        info = pltpu.get_tpu_info()
        for attr in ("num_cores", "core_count", "num_tensorcores"):
            n = getattr(info, attr, None)
            if n:
                return int(n)
    except Exception:
        pass
    try:
        dev = jax.devices()[0]
        n = getattr(dev, "num_cores", None)
        if n:
            return int(n)
        if "v7" in str(getattr(dev, "device_kind", "")).lower():
            return 2
    except Exception:
        pass
    return 1


def _vmem_budget_bytes():
    try:
        cap = int(pltpu.get_tpu_info().vmem_capacity_bytes)
    except Exception:
        cap = 64 << 20  # conservative fallback: v7x per-TC physical VMEM
    return int(cap * 0.75)  # leave headroom for compiler-internal scratch


def _pick_batch_block(B, S, num_cores, vmem_budget, use_bf16):
    """Largest batch fold per grid step that fits the VMEM budget.

    Single-TC chips (v5e/v6e): one grid step for the whole batch is best
    (amortizes ~0.35us/step overhead, fills MXU sublanes).  v7x (2 TCs):
    prefer a step count that is a multiple of the core count for balance.
    Returns None if even bblk=1 does not fit (caller must KV-tile).
    """
    def est_bytes(bblk):
        rows = bblk * S
        wbytes = 2 if use_bf16 else 4
        sxs = 3 * bblk * S * S * 4                            # scores/exp/prob f32 temps
        qkv = rows * 3 * DP * (4 + (2 if use_bf16 else 0))    # f32 acc + bf16 copies
        io = 2 * rows * D * 4 + 2 * rows * DP * 4             # double-buffered x / out
        wts = 2 * (D * 3 * DP * wbytes + 3 * DP * 4)          # double-buffered weights
        return sxs + qkv + io + wts

    feasible = [c for c in range(1, B + 1)
                if B % c == 0 and est_bytes(c) <= vmem_budget]
    if not feasible:
        return None
    if num_cores >= 2:
        balanced = [c for c in feasible if (B // c) % num_cores == 0]
        if balanced:
            return max(balanced)
        multi = [c for c in feasible if (B // c) >= num_cores]
        if multi:
            return max(multi)
    return max(feasible)


# ---------------------------------------------------------------------------
# Public API
# ---------------------------------------------------------------------------
def prepare_magic_params(wq, bq, wk, bk, wv, bv, use_bf16=True):
    """Build the fused, lane-padded QKV params once per model (not per call).

    wqkv: (64, 3*128) = [Wq^T*s | 0 | Wk^T | 0 | Wv^T | 0],  s = 1/sqrt(64)
    bqkv: (1, 3*128)  = [bq*s   | 0 | bk   | 0 | bv   | 0]
    """
    scale = 1.0 / math.sqrt(D)
    wqkv = jnp.zeros((D, 3 * DP), jnp.float32)
    wqkv = wqkv.at[:, 0 * DP:0 * DP + D].set(wq.T * scale)
    wqkv = wqkv.at[:, 1 * DP:1 * DP + D].set(wk.T)
    wqkv = wqkv.at[:, 2 * DP:2 * DP + D].set(wv.T)
    bqkv = jnp.zeros((1, 3 * DP), jnp.float32)
    bqkv = bqkv.at[0, 0 * DP:0 * DP + D].set(bq * scale)
    bqkv = bqkv.at[0, 1 * DP:1 * DP + D].set(bk)
    bqkv = bqkv.at[0, 2 * DP:2 * DP + D].set(bv)
    if use_bf16:
        wqkv = wqkv.astype(jnp.bfloat16)
    return wqkv, bqkv


def magic_forward(x, wqkv, bqkv, batch_block=None):
    """x: (B, S, 64) float32; wqkv/bqkv from prepare_magic_params."""
    B, S, d = x.shape
    assert d == D
    # TODO(synk): support S % 8 != 0 via key-masked sequence padding.
    assert S % 8 == 0, "sequence length must be a multiple of 8 (sublane alignment)"
    use_bf16 = (wqkv.dtype == jnp.bfloat16)

    num_cores = _num_tensorcores()
    vmem_limit = _vmem_budget_bytes()

    bblk = batch_block if batch_block is not None else _pick_batch_block(
        B, S, num_cores, int(vmem_limit * 0.7), use_bf16)
    if bblk is None:
        # TODO(synk): KV-tiled online-softmax (flash) path for very large S.
        raise NotImplementedError(
            f"S={S}: a single (S, S) scores tile exceeds the VMEM budget; "
            "the KV-tiled online-softmax path is not implemented yet")
    assert B % bblk == 0
    grid = (B // bblk,)
    rows = bblk * S

    x2 = x.reshape(B * S, D)  # wrapper-side flatten: free layout plumbing

    flops = 2 * B * S * D * (3 * DP) + 2 * 2 * B * S * S * DP
    bytes_accessed = ((B * S * D + B * S * DP + 3 * DP) * 4
                      + int(wqkv.size) * wqkv.dtype.itemsize)
    transcendentals = B * S * S

    out_pad = pl.pallas_call(
        partial(_attn_kernel, bblk=bblk, seq=S, use_bf16=use_bf16),
        out_shape=jax.ShapeDtypeStruct((B * S, DP), x.dtype),
        grid_spec=pltpu.PrefetchScalarGridSpec(
            num_scalar_prefetch=0,
            grid=grid,
            in_specs=[
                pl.BlockSpec((rows, D), lambda i: (i, 0)),      # x rows
                pl.BlockSpec((D, 3 * DP), lambda i: (0, 0)),    # fused padded W_qkv
                pl.BlockSpec((1, 3 * DP), lambda i: (0, 0)),    # fused padded b_qkv
            ],
            out_specs=pl.BlockSpec((rows, DP), lambda i: (i, 0)),
        ),
        compiler_params=pltpu.CompilerParams(
            dimension_semantics=("parallel",),
            vmem_limit_bytes=vmem_limit,
        ),
        cost_estimate=pl.CostEstimate(
            flops=flops,
            transcendentals=transcendentals,
            bytes_accessed=bytes_accessed,
        ),
    )(x2, wqkv, bqkv)

    # Strip the zero lane-pad (cheap wrapper-side slice) and restore (B, S, 64).
    return out_pad[:, :D].reshape(B, S, D)


def magic_reference(x, wq, bq, wk, bk, wv, bv):
    q = x @ wq.T + bq
    k = x @ wk.T + bk
    v = x @ wv.T + bv
    s = jnp.einsum("bqd,bkd->bqk", q, k) / math.sqrt(D)
    p = jax.nn.softmax(s, axis=-1)
    return jnp.einsum("bqk,bkd->bqd", p, v)


if __name__ == "__main__":
    key = jax.random.PRNGKey(0)
    kx, kq, kbq, kk, kbk, kv_, kbv = jax.random.split(key, 7)

    B, S = 2, 8
    x = jax.random.normal(kx, (B, S, D), dtype=jnp.float32)

    # Deterministic parameter init (PyTorch-Linear-shaped: (out, in) weights).
    bound = 1.0 / math.sqrt(D)
    wq = jax.random.uniform(kq, (D, D), jnp.float32, -bound, bound)
    bq = jax.random.uniform(kbq, (D,), jnp.float32, -bound, bound)
    wk = jax.random.uniform(kk, (D, D), jnp.float32, -bound, bound)
    bk = jax.random.uniform(kbk, (D,), jnp.float32, -bound, bound)
    wv = jax.random.uniform(kv_, (D, D), jnp.float32, -bound, bound)
    bv = jax.random.uniform(kbv, (D,), jnp.float32, -bound, bound)

    ref = magic_reference(x, wq, bq, wk, bk, wv, bv)

    # Exact-precision path (f32 matmuls), faithful to the PyTorch module.
    wqkv32, bqkv32 = prepare_magic_params(wq, bq, wk, bk, wv, bv, use_bf16=False)
    out32 = magic_forward(x, wqkv32, bqkv32)
    jax.block_until_ready(out32)
    assert out32.shape == (B, S, D)
    assert jnp.allclose(out32, ref, atol=2e-3, rtol=2e-3), "f32 kernel mismatch"

    # Default perf config: bf16 matmul operands, f32 accumulation (MXU-native
    # on v5e/v6e/v7x); softmax stays f32, so only matmul rounding changes.
    wqkv16, bqkv16 = prepare_magic_params(wq, bq, wk, bk, wv, bv, use_bf16=True)
    out16 = magic_forward(x, wqkv16, bqkv16)
    jax.block_until_ready(out16)
    assert out16.shape == (B, S, D)
    assert jnp.allclose(out16, ref, atol=3e-2, rtol=3e-2), "bf16 kernel mismatch"

    print("KERNEL_OK")
</pallas_src>

<mosaic_0001>
module attributes {stable_mosaic.version = 11 : i64} {
  func.func @_attn_kernel(%arg0: i32, %arg1: memref<16x64xf32, #tpu.memory_space<vmem>>, %arg2: memref<64x384xf32, #tpu.memory_space<vmem>>, %arg3: memref<1x384xf32, #tpu.memory_space<vmem>>, %arg4: memref<16x128xf32, #tpu.memory_space<vmem>>) attributes {dimension_semantics = [#tpu.dimension_semantics<parallel>], iteration_bounds = array<i64: 1>, scalar_prefetch = 0 : i64, scratch_operands = 0 : i64, tpu.core_type = #tpu.core_type<tc>, window_params = [{transform_indices = @transform_0, window_bounds = array<i64: 16, 64>}, {pipeline_mode = #tpu.pipeline_mode<synchronous>, transform_indices = @transform_1, window_bounds = array<i64: 64, 384>}, {pipeline_mode = #tpu.pipeline_mode<synchronous>, transform_indices = @transform_2, window_bounds = array<i64: 1, 384>}, {transform_indices = @transform_3, window_bounds = array<i64: 16, 128>}]} {
    %c0 = arith.constant 0 : index
    %c0_0 = arith.constant 0 : index
    %0 = vector.load %arg1[%c0, %c0_0] : memref<16x64xf32, #tpu.memory_space<vmem>>, vector<16x64xf32>
    %c0_1 = arith.constant 0 : index
    %c0_2 = arith.constant 0 : index
    %1 = vector.load %arg2[%c0_1, %c0_2] : memref<64x384xf32, #tpu.memory_space<vmem>>, vector<64x384xf32>
    %cst = arith.constant dense<0.000000e+00> : vector<16x384xf32>
    %2 = tpu.matmul %0, %1, %cst {dimension_numbers = #tpu.dot_dimension_numbers<[1], [0], [0], [1], [0, 0, 1, 1], [], []>} : vector<16x64xf32>, vector<64x384xf32>, vector<16x384xf32> -> vector<16x384xf32>
    %c0_3 = arith.constant 0 : index
    %c0_4 = arith.constant 0 : index
    %3 = vector.load %arg3[%c0_3, %c0_4] : memref<1x384xf32, #tpu.memory_space<vmem>>, vector<1x384xf32>
    %4 = vector.broadcast %3 : vector<1x384xf32> to vector<16x384xf32>
    %5 = arith.addf %2, %4 : vector<16x384xf32>
    %6 = vector.shape_cast %5 : vector<16x384xf32> to vector<2x8x384xf32>
    %7 = vector.extract_strided_slice %6 {offsets = [0, 0, 0], sizes = [2, 8, 128], strides = [1, 1, 1]} : vector<2x8x384xf32> to vector<2x8x128xf32>
    %8 = vector.extract_strided_slice %6 {offsets = [0, 0, 128], sizes = [2, 8, 128], strides = [1, 1, 1]} : vector<2x8x384xf32> to vector<2x8x128xf32>
    %9 = vector.extract_strided_slice %6 {offsets = [0, 0, 256], sizes = [2, 8, 128], strides = [1, 1, 1]} : vector<2x8x384xf32> to vector<2x8x128xf32>
    "tpu.trace_start"() <{level = 10 : i32, message = "bqd,bkd->bqk"}> : () -> ()
    %cst_5 = arith.constant dense<0.000000e+00> : vector<2x8x8xf32>
    %10 = tpu.matmul %7, %8, %cst_5 {dimension_numbers = #tpu.dot_dimension_numbers<[2], [2], [1], [1], [0, 0, 0, 1, 1, 1], [0], [0]>} : vector<2x8x128xf32>, vector<2x8x128xf32>, vector<2x8x8xf32> -> vector<2x8x8xf32>
    "tpu.trace_stop"() : () -> ()
    %cst_6 = arith.constant dense<0xFF800000> : vector<2x8xf32>
    %11 = vector.multi_reduction <maximumf>, %10, %cst_6 [2] : vector<2x8x8xf32> to vector<2x8xf32>
    %12 = vector.shape_cast %11 : vector<2x8xf32> to vector<2x8x1xf32>
    %13 = vector.broadcast %12 : vector<2x8x1xf32> to vector<2x8x8xf32>
    %14 = arith.subf %10, %13 : vector<2x8x8xf32>
    %15 = math.exp %14 : vector<2x8x8xf32>
    %cst_7 = arith.constant dense<0.000000e+00> : vector<2x8xf32>
    %16 = vector.multi_reduction <add>, %15, %cst_7 [2] : vector<2x8x8xf32> to vector<2x8xf32>
    %17 = vector.shape_cast %16 : vector<2x8xf32> to vector<2x8x1xf32>
    %cst_8 = arith.constant 1.000000e+00 : f32
    %18 = vector.broadcast %cst_8 : f32 to vector<2x8x1xf32>
    %19 = arith.divf %18, %17 : vector<2x8x1xf32>
    %20 = vector.broadcast %19 : vector<2x8x1xf32> to vector<2x8x8xf32>
    %21 = arith.mulf %15, %20 : vector<2x8x8xf32>
    "tpu.trace_start"() <{level = 10 : i32, message = "bqk,bkd->bqd"}> : () -> ()
    %cst_9 = arith.constant dense<0.000000e+00> : vector<2x8x128xf32>
    %22 = tpu.matmul %21, %9, %cst_9 {dimension_numbers = #tpu.dot_dimension_numbers<[2], [1], [1], [2], [0, 0, 0, 1, 1, 2], [0], [0]>} : vector<2x8x8xf32>, vector<2x8x128xf32>, vector<2x8x128xf32> -> vector<2x8x128xf32>
    "tpu.trace_stop"() : () -> ()
    %23 = vector.shape_cast %22 : vector<2x8x128xf32> to vector<16x128xf32>
    %c0_10 = arith.constant 0 : index
    %c0_11 = arith.constant 0 : index
    %24 = vector.load %arg4[%c0_10, %c0_11] : memref<16x128xf32, #tpu.memory_space<vmem>>, vector<16x128xf32>
    tpu.vector_store %arg4[%c0_10, %c0_11], %23 {strides = array<i32>} : memref<16x128xf32, #tpu.memory_space<vmem>>, vector<16x128xf32>,
    return
  }
  func.func @transform_0(%arg0: i32) -> (i32, i32) {
    %c0_i32 = arith.constant 0 : i32
    %c0_i32_0 = arith.constant 0 : i32
    return %arg0, %c0_i32 : i32, i32
  }
  func.func @transform_1(%arg0: i32) -> (i32, i32) {
    %c0_i32 = arith.constant 0 : i32
    %c0_i32_0 = arith.constant 0 : i32
    %c0_i32_1 = arith.constant 0 : i32
    return %c0_i32, %c0_i32_0 : i32, i32
  }
  func.func @transform_2(%arg0: i32) -> (i32, i32) {
    %c0_i32 = arith.constant 0 : i32
    %c0_i32_0 = arith.constant 0 : i32
    %c0_i32_1 = arith.constant 0 : i32
    return %c0_i32, %c0_i32_0 : i32, i32
  }
  func.func @transform_3(%arg0: i32) -> (i32, i32) {
    %c0_i32 = arith.constant 0 : i32
    %c0_i32_0 = arith.constant 0 : i32
    return %arg0, %c0_i32 : i32, i32
  }
}

</mosaic_0001>

<llo_original>
// kernel: tpu_custom_call.1
$region0: #{tpu_custom_call.1}
  #allocation0 [shape = 'u32[]', space=smem, size = 0x4, offset = 0x4, fixed_abs, tag = 'smem constant byte address 0x4 - core index']
  #allocation1 [shape = 'u32[144,128]{1,0:T(1,128)}', space=vmem, size = 0x12000, scoped, tag = 'internal scratch']
  %s0 = inlined_call_operand.hbm [shape: f32[16,64], index: 0, kind: input, shape index: {}]
  %s1 = inlined_call_operand.hbm [shape: f32[64,384], index: 1, kind: input, shape index: {}]
  %s2 = inlined_call_operand.vmem [shape: f32[1,384], index: 2, kind: input, shape index: {}]
  %s3 = inlined_call_operand.hbm [shape: f32[16,128], index: 3, kind: output, shape index: {}]
  %s4 = sld [smem:[#allocation0]]
  $region30: #{tpu_custom_call.1} parent=0
    _
  %s6 = ssub.s32 1, %s4
  %s7 = scalar_select 0, %s6, %s4
  $region1: #{tpu_custom_call.1} parent=0
    #allocation2 [shape = 'u8[8192]{0}', space=vmem, size = 0x2000, scoped, tag = 'input window, operand 0, single buffered']
    #allocation3 [shape = 's32[1]{0}', space=sflag, size = 0x4, scoped, tag = 'scoped memory for tpu_custom_call.1']
    #allocation4 [shape = 's32[1]{0}', space=sflag, size = 0x4, scoped, tag = 'scoped memory for tpu_custom_call.1']
    #allocation5 [shape = 'u8[98304]{0}', space=vmem, size = 0x18000, scoped, tag = 'input window, operand 1, single buffered']
    #allocation6 [shape = 's32[1]{0}', space=sflag, size = 0x4, scoped, tag = 'scoped memory for tpu_custom_call.1']
    #allocation7 [shape = 'u8[8192]{0}', space=vmem, size = 0x2000, scoped, tag = 'output window, operand 0, single buffered']
    %8 = vsyncpa [#allocation3], 0
    %9 = vsyncpa [#allocation6], 0
    %10 = vsyncpa [#allocation4], 0
    // Predicated region
    $region2: #{tpu_custom_call.1} parent=1 // pred_check
      _
    $region3: #{tpu_custom_call.1} parent=1 // pred_check_branch
      %12 = sbr.rel (0) target = $region5
    $region4: #{tpu_custom_call.1} parent=1 // pred_region
      %s14 = ssub.s32 256, 256
      %15 = vsyncadd [#allocation3], %s14
      %s16 = sshll.u32 [#allocation2], 4
      %s17 = int_to_ptr.vmem [resolvable:$true] %s16
      %22 = dma.hbm_to_vmem [thread:$0]  %s0, 256, %s17, [#allocation3], 128, 128, 8
    $region5: #{tpu_custom_call.1} parent=1 // pred_fallthru
      _
    // Predicated region
    $region6: #{tpu_custom_call.1} parent=1 // pred_check
      _
    $region7: #{tpu_custom_call.1} parent=1 // pred_check_branch
      %24 = sbr.rel (0) target = $region9
    $region8: #{tpu_custom_call.1} parent=1 // pred_region
      %s26 = ssub.s32 3072, 3072
      %27 = vsyncadd [#allocation6], %s26
      %s28 = sshll.u32 [#allocation5], 4
      %s29 = int_to_ptr.vmem [resolvable:$true] %s28
      %34 = dma.hbm_to_vmem [thread:$0]  %s1, 3072, %s29, [#allocation6], 384, 384, 24
    $region9: #{tpu_custom_call.1} parent=1 // pred_fallthru
      _
    // Predicated region
    $region10: #{tpu_custom_call.1} parent=1 // pred_check
      _
    $region11: #{tpu_custom_call.1} parent=1 // pred_check_branch
      %36 = sbr.rel (0) target = $region13
    $region12: #{tpu_custom_call.1} parent=1 // pred_region
      _
    $region13: #{tpu_custom_call.1} parent=1 // pred_fallthru
      _
    // Predicated region
    $region14: #{tpu_custom_call.1} parent=1 // pred_check
      _
    $region15: #{tpu_custom_call.1} parent=1 // pred_check_branch
      %38 = sbr.rel (0) target = $region17
    $region16: #{tpu_custom_call.1} parent=1 // pred_region
      %39 = dma.done [#allocation3], 256
    $region17: #{tpu_custom_call.1} parent=1 // pred_fallthru
      _
    // Predicated region
    $region18: #{tpu_custom_call.1} parent=1 // pred_check
      _
    $region19: #{tpu_custom_call.1} parent=1 // pred_check_branch
      %41 = sbr.rel (0) target = $region21
    $region20: #{tpu_custom_call.1} parent=1 // pred_region
      %42 = dma.done [#allocation6], 3072
    $region21: #{tpu_custom_call.1} parent=1 // pred_fallthru
      _
    %v43 = vld [vmem:[#allocation2] sm:$0xff]
    %v44 = vld [vmem:[#allocation2 + $0x8] sm:$0xff]
    %v45 = vld [vmem:[#allocation5] sm:$0xff]
    %v46 = vld [vmem:[#allocation5 + $0x8] sm:$0xff]
    %v47 = vld [vmem:[#allocation5 + $0x10] sm:$0xff]
    %v48 = vld [vmem:[#allocation5 + $0x18] sm:$0xff]
    %v49 = vld [vmem:[#allocation5 + $0x20] sm:$0xff]
    %v50 = vld [vmem:[#allocation5 + $0x28] sm:$0xff]
    %v51 = vld [vmem:[#allocation5 + $0x30] sm:$0xff]
    %v52 = vld [vmem:[#allocation5 + $0x38] sm:$0xff]
    %v53 = vld [vmem:[#allocation5 + $0x40] sm:$0xff]
    %v54 = vld [vmem:[#allocation5 + $0x48] sm:$0xff]
    %v55 = vld [vmem:[#allocation5 + $0x50] sm:$0xff]
    %v56 = vld [vmem:[#allocation5 + $0x58] sm:$0xff]
    %v57 = vld [vmem:[#allocation5 + $0x60] sm:$0xff]
    %v58 = vld [vmem:[#allocation5 + $0x68] sm:$0xff]
    %v59 = vld [vmem:[#allocation5 + $0x70] sm:$0xff]
    %v60 = vld [vmem:[#allocation5 + $0x78] sm:$0xff]
    %v61 = vld [vmem:[#allocation5 + $0x80] sm:$0xff]
    %v62 = vld [vmem:[#allocation5 + $0x88] sm:$0xff]
    %v63 = vld [vmem:[#allocation5 + $0x90] sm:$0xff]
    %v64 = vld [vmem:[#allocation5 + $0x98] sm:$0xff]
    %v65 = vld [vmem:[#allocation5 + $0xa0] sm:$0xff]
    %v66 = vld [vmem:[#allocation5 + $0xa8] sm:$0xff]
    %v67 = vld [vmem:[#allocation5 + $0xb0] sm:$0xff]
    %v68 = vld [vmem:[#allocation5 + $0xb8] sm:$0xff]
    %v69 = vld [vmem:[%s2] sm:$0x7]
    %v71 = vlaneseq
    %v72 = vshrl.u32 %v71, 7
    %v73 = vsub.s32 0, %v72
    %v74 = vrot.slane %v69, %v73
    %v75 = vlaneseq
    %v76 = vshrl.u32 %v75, 7
    %v77 = vsub.s32 1, %v76
    %v78 = vrot.slane %v69, %v77
    %v79 = vlaneseq
    %v80 = vshrl.u32 %v79, 7
    %v81 = vsub.s32 2, %v80
    %v82 = vrot.slane %v69, %v81
    %vm86 = vcmask 523264
    %v88 = vsel %vm86, %v43, 0
    %v91 = vsel %vm86, %v44, 0
    %93 = vmatprep.subr.mxu0 0.0
    %94 = vmatpush1.msra.mxu0 0.0
    %95 = vmatprep.subr.mxu0 0.0
    %96 = vmatpush1.msra.mxu0 0.0
    %97 = vmatprep.subr.mxu0 0.0
    %98 = vmatpush1.msra.mxu0 0.0
    %99 = vmatprep.subr.mxu0 0.0
    %100 = vmatpush1.msra.mxu0 0.0
    %101 = vmatprep.subr.mxu0 0.0
    %102 = vmatpush1.msra.mxu0 0.0
    %103 = vmatprep.subr.mxu0 0.0
    %104 = vmatpush1.msra.mxu0 0.0
    %105 = vmatprep.subr.mxu0 0.0
    %106 = vmatpush1.msra.mxu0 0.0
    %107 = vmatprep.subr.mxu0 0.0
    %108 = vmatpush1.msra.mxu0 0.0
    %109 = vmatprep.subr.mxu0 %v67
    %110 = vmatpush1.msra.mxu0 %v66
    %111 = vmatprep.subr.mxu0 %v64
    %112 = vmatpush1.msra.mxu0 %v63
    %113 = vmatprep.subr.mxu0 %v61
    %114 = vmatpush1.msra.mxu0 %v60
    %115 = vmatprep.subr.mxu0 %v58
    %116 = vmatpush1.msra.mxu0 %v57
    %117 = vmatprep.subr.mxu0 %v55
    %118 = vmatpush1.msra.mxu0 %v54
    %119 = vmatprep.subr.mxu0 %v52
    %120 = vmatpush1.msra.mxu0 %v51
    %121 = vmatprep.subr.mxu0 %v49
    %122 = vmatpush1.msra.mxu0 %v48
    %123 = vmatprep.subr.mxu0 %v46
    %124 = vmatpush1.msra.mxu0 %v45
    %125 = vmatprep.subr.mxu0 0.0
    %126 = vmatpush2.msra.mxu0 0.0
    %127 = vmatprep.subr.mxu0 0.0
    %128 = vmatpush2.msra.mxu0 0.0
    %129 = vmatprep.subr.mxu0 0.0
    %130 = vmatpush2.msra.mxu0 0.0
    %131 = vmatprep.subr.mxu0 0.0
    %132 = vmatpush2.msra.mxu0 0.0
    %133 = vmatprep.subr.mxu0 0.0
    %134 = vmatpush2.msra.mxu0 0.0
    %135 = vmatprep.subr.mxu0 0.0
    %136 = vmatpush2.msra.mxu0 0.0
    %137 = vmatprep.subr.mxu0 0.0
    %138 = vmatpush2.msra.mxu0 0.0
    %139 = vmatprep.subr.mxu0 0.0
    %140 = vmatpush2.msra.mxu0 0.0
    %141 = vmatprep.subr.mxu0 0.0
    %142 = vmatpush2.msra.mxu0 0.0
    %143 = vmatprep.subr.mxu0 0.0
    %144 = vmatpush2.msra.mxu0 0.0
    %145 = vmatprep.subr.mxu0 0.0
    %146 = vmatpush2.msra.mxu0 0.0
    %147 = vmatprep.subr.mxu0 0.0
    %148 = vmatpush2.msra.mxu0 0.0
    %149 = vmatprep.subr.mxu0 0.0
    %150 = vmatpush2.msra.mxu0 0.0
    %151 = vmatprep.subr.mxu0 0.0
    %152 = vmatpush2.msra.mxu0 0.0
    %153 = vmatprep.subr.mxu0 0.0
    %154 = vmatpush2.msra.mxu0 0.0
    %155 = vmatprep.subr.mxu0 0.0
    %156 = vmatpush2.msra.mxu0 0.0
    %157 = vmatprep.mubr.f32.mxu0 0.0
    %158 = vmatmul.mubr.f32.gmra.mxu0 %v88
    %v159 = vpop.f32.mrf.mxu0
    %v160 = vadd.f32 %v74, %v159
    %v161 = vpop.f32.mrf.mxu0
    %v162 = vadd.f32 %v78, %v161
    %163 = vmatprep.mubr.f32.mxu0 0.0
    %164 = vmatmul.mubr.f32.gmra.mxu0 %v91
    %v165 = vpop.f32.mrf.mxu0
    %v166 = vadd.f32 %v74, %v165
    %v167 = vpop.f32.mrf.mxu0
    %v168 = vadd.f32 %v78, %v167
    %169 = vdwg.mxu0
    %170 = vmatprep.subr.mxu0 0.0
    %171 = vmatpush1.msra.mxu0 0.0
    %172 = vmatprep.subr.mxu0 0.0
    %173 = vmatpush1.msra.mxu0 0.0
    %174 = vmatprep.subr.mxu0 0.0
    %175 = vmatpush1.msra.mxu0 0.0
    %176 = vmatprep.subr.mxu0 0.0
    %177 = vmatpush1.msra.mxu0 0.0
    %178 = vmatprep.subr.mxu0 0.0
    %179 = vmatpush1.msra.mxu0 0.0
    %180 = vmatprep.subr.mxu0 0.0
    %181 = vmatpush1.msra.mxu0 0.0
    %182 = vmatprep.subr.mxu0 0.0
    %183 = vmatpush1.msra.mxu0 0.0
    %184 = vmatprep.subr.mxu0 0.0
    %185 = vmatpush1.msra.mxu0 0.0
    %186 = vmatprep.subr.mxu0 0.0
    %187 = vmatpush1.msra.mxu0 %v68
    %188 = vmatprep.subr.mxu0 0.0
    %189 = vmatpush1.msra.mxu0 %v65
    %190 = vmatprep.subr.mxu0 0.0
    %191 = vmatpush1.msra.mxu0 %v62
    %192 = vmatprep.subr.mxu0 0.0
    %193 = vmatpush1.msra.mxu0 %v59
    %194 = vmatprep.subr.mxu0 0.0
    %195 = vmatpush1.msra.mxu0 %v56
    %196 = vmatprep.subr.mxu0 0.0
    %197 = vmatpush1.msra.mxu0 %v53
    %198 = vmatprep.subr.mxu0 0.0
    %199 = vmatpush1.msra.mxu0 %v50
    %200 = vmatprep.subr.mxu0 0.0
    %201 = vmatpush1.msra.mxu0 %v47
    %202 = vmatprep.subr.mxu0 0.0
    %203 = vmatpush2.msra.mxu0 0.0
    %204 = vmatprep.subr.mxu0 0.0
    %205 = vmatpush2.msra.mxu0 0.0
    %206 = vmatprep.subr.mxu0 0.0
    %207 = vmatpush2.msra.mxu0 0.0
    %208 = vmatprep.subr.mxu0 0.0
    %209 = vmatpush2.msra.mxu0 0.0
    %210 = vmatprep.subr.mxu0 0.0
    %211 = vmatpush2.msra.mxu0 0.0
    %212 = vmatprep.subr.mxu0 0.0
    %213 = vmatpush2.msra.mxu0 0.0
    %214 = vmatprep.subr.mxu0 0.0
    %215 = vmatpush2.msra.mxu0 0.0
    %216 = vmatprep.subr.mxu0 0.0
    %217 = vmatpush2.msra.mxu0 0.0
    %218 = vmatprep.subr.mxu0 0.0
    %219 = vmatpush2.msra.mxu0 0.0
    %220 = vmatprep.subr.mxu0 0.0
    %221 = vmatpush2.msra.mxu0 0.0
    %222 = vmatprep.subr.mxu0 0.0
    %223 = vmatpush2.msra.mxu0 0.0
    %224 = vmatprep.subr.mxu0 0.0
    %225 = vmatpush2.msra.mxu0 0.0
    %226 = vmatprep.subr.mxu0 0.0
    %227 = vmatpush2.msra.mxu0 0.0
    %228 = vmatprep.subr.mxu0 0.0
    %229 = vmatpush2.msra.mxu0 0.0
    %230 = vmatprep.subr.mxu0 0.0
    %231 = vmatpush2.msra.mxu0 0.0
    %232 = vmatprep.subr.mxu0 0.0
    %233 = vmatpush2.msra.mxu0 0.0
    %234 = vmatprep.mubr.f32.mxu0 0.0
    %235 = vmatmul.mubr.f32.gmra.mxu0 %v88
    %v236 = vpop.f32.mrf.mxu0
    %v237 = vadd.f32 %v82, %v236
    %v238 = vpop.f32.mrf.mxu0
    %239 = vmatprep.mubr.f32.mxu0 0.0
    %240 = vmatmul.mubr.f32.gmra.mxu0 %v91
    %v241 = vpop.f32.mrf.mxu0
    %v242 = vadd.f32 %v82, %v241
    %v243 = vpop.f32.mrf.mxu0
    %244 = vdwg.mxu0
    %245 = vmatprep.subr.mxu0 0.0
    %246 = vmatpush1.xpose.msra.mxu0 0.0
    %247 = vmatprep.subr.mxu0 0.0
    %248 = vmatpush1.xpose.msra.mxu0 0.0
    %249 = vmatprep.subr.mxu0 0.0
    %250 = vmatpush1.xpose.msra.mxu0 0.0
    %251 = vmatprep.subr.mxu0 0.0
    %252 = vmatpush1.xpose.msra.mxu0 0.0
    %253 = vmatprep.subr.mxu0 0.0
    %254 = vmatpush1.xpose.msra.mxu0 0.0
    %255 = vmatprep.subr.mxu0 0.0
    %256 = vmatpush1.xpose.msra.mxu0 0.0
    %257 = vmatprep.subr.mxu0 0.0
    %258 = vmatpush1.xpose.msra.mxu0 0.0
    %259 = vmatprep.subr.mxu0 0.0
    %260 = vmatpush1.xpose.msra.mxu0 0.0
    %261 = vmatprep.subr.mxu0 0.0
    %262 = vmatpush1.xpose.msra.mxu0 0.0
    %263 = vmatprep.subr.mxu0 0.0
    %264 = vmatpush1.xpose.msra.mxu0 0.0
    %265 = vmatprep.subr.mxu0 0.0
    %266 = vmatpush1.xpose.msra.mxu0 0.0
    %267 = vmatprep.subr.mxu0 0.0
    %268 = vmatpush1.xpose.msra.mxu0 0.0
    %269 = vmatprep.subr.mxu0 0.0
    %270 = vmatpush1.xpose.msra.mxu0 0.0
    %271 = vmatprep.subr.mxu0 0.0
    %272 = vmatpush1.xpose.msra.mxu0 0.0
    %273 = vmatprep.subr.mxu0 0.0
    %274 = vmatpush1.xpose.msra.mxu0 0.0
    %275 = vmatprep.subr.mxu0 0.0
    %276 = vmatpush1.xpose.msra.mxu0 %v162
    %277 = vmatprep.subr.mxu0 0.0
    %278 = vmatpush2.xpose.msra.mxu0 0.0
    %279 = vmatprep.subr.mxu0 0.0
    %280 = vmatpush2.xpose.msra.mxu0 0.0
    %281 = vmatprep.subr.mxu0 0.0
    %282 = vmatpush2.xpose.msra.mxu0 0.0
    %283 = vmatprep.subr.mxu0 0.0
    %284 = vmatpush2.xpose.msra.mxu0 0.0
    %285 = vmatprep.subr.mxu0 0.0
    %286 = vmatpush2.xpose.msra.mxu0 0.0
    %287 = vmatprep.subr.mxu0 0.0
    %288 = vmatpush2.xpose.msra.mxu0 0.0
    %289 = vmatprep.subr.mxu0 0.0
    %290 = vmatpush2.xpose.msra.mxu0 0.0
    %291 = vmatprep.subr.mxu0 0.0
    %292 = vmatpush2.xpose.msra.mxu0 0.0
    %293 = vmatprep.subr.mxu0 0.0
    %294 = vmatpush2.xpose.msra.mxu0 0.0
    %295 = vmatprep.subr.mxu0 0.0
    %296 = vmatpush2.xpose.msra.mxu0 0.0
    %297 = vmatprep.subr.mxu0 0.0
    %298 = vmatpush2.xpose.msra.mxu0 0.0
    %299 = vmatprep.subr.mxu0 0.0
    %300 = vmatpush2.xpose.msra.mxu0 0.0
    %301 = vmatprep.subr.mxu0 0.0
    %302 = vmatpush2.xpose.msra.mxu0 0.0
    %303 = vmatprep.subr.mxu0 0.0
    %304 = vmatpush2.xpose.msra.mxu0 0.0
    %305 = vmatprep.subr.mxu0 0.0
    %306 = vmatpush2.xpose.msra.mxu0 0.0
    %307 = vmatprep.subr.mxu0 0.0
    %308 = vmatpush2.xpose.msra.mxu0 0.0
    %309 = vmatprep.mubr.f32.mxu0 0.0
    %310 = vmatmul.mubr.f32.gmra.mxu0 %v160
    %v311 = vpop.f32.mrf.mxu0
    %v312 = vadd.f32 0.0, %v311
    %v313 = vpop.f32.mrf.mxu0
    %314 = vdwg.mxu0
    %315 = vmatprep.subr.mxu0 0.0
    %316 = vmatpush1.xpose.msra.mxu0 0.0
    %317 = vmatprep.subr.mxu0 0.0
    %318 = vmatpush1.xpose.msra.mxu0 0.0
    %319 = vmatprep.subr.mxu0 0.0
    %320 = vmatpush1.xpose.msra.mxu0 0.0
    %321 = vmatprep.subr.mxu0 0.0
    %322 = vmatpush1.xpose.msra.mxu0 0.0
    %323 = vmatprep.subr.mxu0 0.0
    %324 = vmatpush1.xpose.msra.mxu0 0.0
    %325 = vmatprep.subr.mxu0 0.0
    %326 = vmatpush1.xpose.msra.mxu0 0.0
    %327 = vmatprep.subr.mxu0 0.0
    %328 = vmatpush1.xpose.msra.mxu0 0.0
    %329 = vmatprep.subr.mxu0 0.0
    %330 = vmatpush1.xpose.msra.mxu0 0.0
    %331 = vmatprep.subr.mxu0 0.0
    %332 = vmatpush1.xpose.msra.mxu0 0.0
    %333 = vmatprep.subr.mxu0 0.0
    %334 = vmatpush1.xpose.msra.mxu0 0.0
    %335 = vmatprep.subr.mxu0 0.0
    %336 = vmatpush1.xpose.msra.mxu0 0.0
    %337 = vmatprep.subr.mxu0 0.0
    %338 = vmatpush1.xpose.msra.mxu0 0.0
    %339 = vmatprep.subr.mxu0 0.0
    %340 = vmatpush1.xpose.msra.mxu0 0.0
    %341 = vmatprep.subr.mxu0 0.0
    %342 = vmatpush1.xpose.msra.mxu0 0.0
    %343 = vmatprep.subr.mxu0 0.0
    %344 = vmatpush1.xpose.msra.mxu0 0.0
    %345 = vmatprep.subr.mxu0 0.0
    %346 = vmatpush1.xpose.msra.mxu0 %v168
    %347 = vmatprep.subr.mxu0 0.0
    %348 = vmatpush2.xpose.msra.mxu0 0.0
    %349 = vmatprep.subr.mxu0 0.0
    %350 = vmatpush2.xpose.msra.mxu0 0.0
    %351 = vmatprep.subr.mxu0 0.0
    %352 = vmatpush2.xpose.msra.mxu0 0.0
    %353 = vmatprep.subr.mxu0 0.0
    %354 = vmatpush2.xpose.msra.mxu0 0.0
    %355 = vmatprep.subr.mxu0 0.0
    %356 = vmatpush2.xpose.msra.mxu0 0.0
    %357 = vmatprep.subr.mxu0 0.0
    %358 = vmatpush2.xpose.msra.mxu0 0.0
    %359 = vmatprep.subr.mxu0 0.0
    %360 = vmatpush2.xpose.msra.mxu0 0.0
    %361 = vmatprep.subr.mxu0 0.0
    %362 = vmatpush2.xpose.msra.mxu0 0.0
    %363 = vmatprep.subr.mxu0 0.0
    %364 = vmatpush2.xpose.msra.mxu0 0.0
    %365 = vmatprep.subr.mxu0 0.0
    %366 = vmatpush2.xpose.msra.mxu0 0.0
    %367 = vmatprep.subr.mxu0 0.0
    %368 = vmatpush2.xpose.msra.mxu0 0.0
    %369 = vmatprep.subr.mxu0 0.0
    %370 = vmatpush2.xpose.msra.mxu0 0.0
    %371 = vmatprep.subr.mxu0 0.0
    %372 = vmatpush2.xpose.msra.mxu0 0.0
    %373 = vmatprep.subr.mxu0 0.0
    %374 = vmatpush2.xpose.msra.mxu0 0.0
    %375 = vmatprep.subr.mxu0 0.0
    %376 = vmatpush2.xpose.msra.mxu0 0.0
    %377 = vmatprep.subr.mxu0 0.0
    %378 = vmatpush2.xpose.msra.mxu0 0.0
    %379 = vmatprep.mubr.f32.mxu0 0.0
    %380 = vmatmul.mubr.f32.gmra.mxu0 %v166
    %v381 = vpop.f32.mrf.mxu0
    %v382 = vadd.f32 0.0, %v381
    %v383 = vpop.f32.mrf.mxu0
    %384 = vdwg.mxu0
    %vm385 = vcmask 64512
    %v386 = vsel %vm385, %v312, -inf
    %387 = vmax.xlane.f32.xlu0 %v386
    %v388 = vpop.xlane.xlu0 %387
    %v389 = vsel %vm385, %v382, -inf
    %390 = vmax.xlane.f32.xlu0 %v389
    %v391 = vpop.xlane.xlu0 %390
    %v392 = vsub.f32 %v312, %v388
    %v393 = vsub.f32 %v382, %v391
    %v394 = vmul.f32 %v392, 1.442695
    %v395 = vpow.pop %v394
    %v396 = vmul.f32 %v393, 1.442695
    %v397 = vpow.pop %v396
    %v398 = vsel %vm385, %v395, 0.0
    %399 = vadd.xlane.f32.xlu0 %v398
    %v400 = vpop.xlane.xlu0 %399
    %v401 = vsel %vm385, %v397, 0.0
    %402 = vadd.xlane.f32.xlu0 %v401
    %v403 = vpop.xlane.xlu0 %402
    %v404 = vrcp.pop %v400
    %v405 = vmul.f32 1.0, %v404
    %v406 = vrcp.pop %v403
    %v407 = vmul.f32 1.0, %v406
    %v408 = vmul.f32 %v395, %v405
    %v409 = vmul.f32 %v397, %v407
    %v411 = vsel %vm385, %v408, 0
    %413 = vmatprep.subr.mxu0 0.0
    %414 = vmatpush1.msra.mxu0 0.0
    %415 = vmatprep.subr.mxu0 0.0
    %416 = vmatpush1.msra.mxu0 0.0
    %417 = vmatprep.subr.mxu0 0.0
    %418 = vmatpush1.msra.mxu0 0.0
    %419 = vmatprep.subr.mxu0 0.0
    %420 = vmatpush1.msra.mxu0 0.0
    %421 = vmatprep.subr.mxu0 0.0
    %422 = vmatpush1.msra.mxu0 0.0
    %423 = vmatprep.subr.mxu0 0.0
    %424 = vmatpush1.msra.mxu0 0.0
    %425 = vmatprep.subr.mxu0 0.0
    %426 = vmatpush1.msra.mxu0 0.0
    %427 = vmatprep.subr.mxu0 0.0
    %428 = vmatpush1.msra.mxu0 0.0
    %429 = vmatprep.subr.mxu0 0.0
    %430 = vmatpush1.msra.mxu0 0.0
    %431 = vmatprep.subr.mxu0 0.0
    %432 = vmatpush1.msra.mxu0 0.0
    %433 = vmatprep.subr.mxu0 0.0
    %434 = vmatpush1.msra.mxu0 0.0
    %435 = vmatprep.subr.mxu0 0.0
    %436 = vmatpush1.msra.mxu0 0.0
    %437 = vmatprep.subr.mxu0 0.0
    %438 = vmatpush1.msra.mxu0 0.0
    %439 = vmatprep.subr.mxu0 0.0
    %440 = vmatpush1.msra.mxu0 0.0
    %441 = vmatprep.subr.mxu0 0.0
    %442 = vmatpush1.msra.mxu0 0.0
    %443 = vmatprep.subr.mxu0 0.0
    %444 = vmatpush1.msra.mxu0 %v237
    %445 = vmatprep.subr.mxu0 0.0
    %446 = vmatpush2.msra.mxu0 0.0
    %447 = vmatprep.subr.mxu0 0.0
    %448 = vmatpush2.msra.mxu0 0.0
    %449 = vmatprep.subr.mxu0 0.0
    %450 = vmatpush2.msra.mxu0 0.0
    %451 = vmatprep.subr.mxu0 0.0
    %452 = vmatpush2.msra.mxu0 0.0
    %453 = vmatprep.subr.mxu0 0.0
    %454 = vmatpush2.msra.mxu0 0.0
    %455 = vmatprep.subr.mxu0 0.0
    %456 = vmatpush2.msra.mxu0 0.0
    %457 = vmatprep.subr.mxu0 0.0
    %458 = vmatpush2.msra.mxu0 0.0
    %459 = vmatprep.subr.mxu0 0.0
    %460 = vmatpush2.msra.mxu0 0.0
    %461 = vmatprep.subr.mxu0 0.0
    %462 = vmatpush2.msra.mxu0 0.0
    %463 = vmatprep.subr.mxu0 0.0
    %464 = vmatpush2.msra.mxu0 0.0
    %465 = vmatprep.subr.mxu0 0.0
    %466 = vmatpush2.msra.mxu0 0.0
    %467 = vmatprep.subr.mxu0 0.0
    %468 = vmatpush2.msra.mxu0 0.0
    %469 = vmatprep.subr.mxu0 0.0
    %470 = vmatpush2.msra.mxu0 0.0
    %471 = vmatprep.subr.mxu0 0.0
    %472 = vmatpush2.msra.mxu0 0.0
    %473 = vmatprep.subr.mxu0 0.0
    %474 = vmatpush2.msra.mxu0 0.0
    %475 = vmatprep.subr.mxu0 0.0
    %476 = vmatpush2.msra.mxu0 0.0
    %477 = vmatprep.mubr.f32.mxu0 0.0
    %478 = vmatmul.mubr.f32.gmra.mxu0 %v411
    %v479 = vpop.f32.mrf.mxu0
    %v480 = vadd.f32 0.0, %v479
    %v481 = vpop.f32.mrf.mxu0
    %482 = vdwg.mxu0
    %v484 = vsel %vm385, %v409, 0
    %486 = vmatprep.subr.mxu0 0.0
    %487 = vmatpush1.msra.mxu0 0.0
    %488 = vmatprep.subr.mxu0 0.0
    %489 = vmatpush1.msra.mxu0 0.0
    %490 = vmatprep.subr.mxu0 0.0
    %491 = vmatpush1.msra.mxu0 0.0
    %492 = vmatprep.subr.mxu0 0.0
    %493 = vmatpush1.msra.mxu0 0.0
    %494 = vmatprep.subr.mxu0 0.0
    %495 = vmatpush1.msra.mxu0 0.0
    %496 = vmatprep.subr.mxu0 0.0
    %497 = vmatpush1.msra.mxu0 0.0
    %498 = vmatprep.subr.mxu0 0.0
    %499 = vmatpush1.msra.mxu0 0.0
    %500 = vmatprep.subr.mxu0 0.0
    %501 = vmatpush1.msra.mxu0 0.0
    %502 = vmatprep.subr.mxu0 0.0
    %503 = vmatpush1.msra.mxu0 0.0
    %504 = vmatprep.subr.mxu0 0.0
    %505 = vmatpush1.msra.mxu0 0.0
    %506 = vmatprep.subr.mxu0 0.0
    %507 = vmatpush1.msra.mxu0 0.0
    %508 = vmatprep.subr.mxu0 0.0
    %509 = vmatpush1.msra.mxu0 0.0
    %510 = vmatprep.subr.mxu0 0.0
    %511 = vmatpush1.msra.mxu0 0.0
    %512 = vmatprep.subr.mxu0 0.0
    %513 = vmatpush1.msra.mxu0 0.0
    %514 = vmatprep.subr.mxu0 0.0
    %515 = vmatpush1.msra.mxu0 0.0
    %516 = vmatprep.subr.mxu0 0.0
    %517 = vmatpush1.msra.mxu0 %v242
    %518 = vmatprep.subr.mxu0 0.0
    %519 = vmatpush2.msra.mxu0 0.0
    %520 = vmatprep.subr.mxu0 0.0
    %521 = vmatpush2.msra.mxu0 0.0
    %522 = vmatprep.subr.mxu0 0.0
    %523 = vmatpush2.msra.mxu0 0.0
    %524 = vmatprep.subr.mxu0 0.0
    %525 = vmatpush2.msra.mxu0 0.0
    %526 = vmatprep.subr.mxu0 0.0
    %527 = vmatpush2.msra.mxu0 0.0
    %528 = vmatprep.subr.mxu0 0.0
    %529 = vmatpush2.msra.mxu0 0.0
    %530 = vmatprep.subr.mxu0 0.0
    %531 = vmatpush2.msra.mxu0 0.0
    %532 = vmatprep.subr.mxu0 0.0
    %533 = vmatpush2.msra.mxu0 0.0
    %534 = vmatprep.subr.mxu0 0.0
    %535 = vmatpush2.msra.mxu0 0.0
    %536 = vmatprep.subr.mxu0 0.0
    %537 = vmatpush2.msra.mxu0 0.0
    %538 = vmatprep.subr.mxu0 0.0
    %539 = vmatpush2.msra.mxu0 0.0
    %540 = vmatprep.subr.mxu0 0.0
    %541 = vmatpush2.msra.mxu0 0.0
    %542 = vmatprep.subr.mxu0 0.0
    %543 = vmatpush2.msra.mxu0 0.0
    %544 = vmatprep.subr.mxu0 0.0
    %545 = vmatpush2.msra.mxu0 0.0
    %546 = vmatprep.subr.mxu0 0.0
    %547 = vmatpush2.msra.mxu0 0.0
    %548 = vmatprep.subr.mxu0 0.0
    %549 = vmatpush2.msra.mxu0 0.0
    %550 = vmatprep.mubr.f32.mxu0 0.0
    %551 = vmatmul.mubr.f32.gmra.mxu0 %v484
    %v552 = vpop.f32.mrf.mxu0
    %v553 = vadd.f32 0.0, %v552
    %v554 = vpop.f32.mrf.mxu0
    %555 = vdwg.mxu0
    %556 = vst [vmem:[#allocation7] sm:$0xff] %v480
    %557 = vst [vmem:[#allocation7 + $0x8] sm:$0xff] %v553
    // Predicated region
    $region22: #{tpu_custom_call.1} parent=1 // pred_check
      _
    $region23: #{tpu_custom_call.1} parent=1 // pred_check_branch
      %559 = sbr.rel (0) target = $region25
    $region24: #{tpu_custom_call.1} parent=1 // pred_region
      %s561 = ssub.s32 256, 256
      %562 = vsyncadd [#allocation4], %s561
      %s563 = sshll.u32 [#allocation7], 4
      %s564 = int_to_ptr.vmem [resolvable:$true] %s563
      %569 = dma.vmem_to_hbm [thread:$0]  %s564, 256, %s3, [#allocation4], 128, 128, 8
    $region25: #{tpu_custom_call.1} parent=1 // pred_fallthru
      _
    // Predicated region
    $region26: #{tpu_custom_call.1} parent=1 // pred_check
      _
    $region27: #{tpu_custom_call.1} parent=1 // pred_check_branch
      %571 = sbr.rel (0) target = $region29
    $region28: #{tpu_custom_call.1} parent=1 // pred_region
      %572 = dma.done [#allocation4], 256
    $region29: #{tpu_custom_call.1} parent=1 // pred_fallthru
      _
    %573 = vsyncpa [#allocation3], 1
    %574 = vsyncpa [#allocation6], 1
    %575 = vsyncpa [#allocation4], 1

</llo_original>
